<compile_context>
chip_gen: v5e
topology: v5e:2x2
jax: 0.10.0
libtpu: 0.0.40
codegen_flags: <defaults>
</compile_context>

<pallas_src>
import math

import jax
import jax.numpy as jnp
import numpy as np
from jax.experimental import pallas as pl
from jax.experimental.pallas import tpu as pltpu

# ----------------------------- configuration -----------------------------
B_GRAPHS = 4     # graphs batched per pallas_call (grid axis, 'parallel')
N_ATOMS = 8      # nodes per graph
N_EDGES = 16     # (padded) directed edges per graph; invalid edges carry index -1
CHANNELS = 32    # nodes.channels
N_ATTRS = 4      # nodes.attributes (one-hot species)
RADIAL = 8       # radial_basis_features
MLP_HIDDEN = 16  # hidden width of the radial-weight MLP
CORRELATION = 3  # symmetric-contraction correlation order

INV_SQRT_C = 1.0 / math.sqrt(CHANNELS)
INV_SQRT_CA = 1.0 / math.sqrt(CHANNELS * N_ATTRS)
Y_00 = 1.0 / math.sqrt(4.0 * math.pi)   # constant 1x0e spherical harmonic


# ----------------------------- fused Pallas kernel (one graph per grid step) -----------------------------
def mace_graph_kernel(send_ref, recv_ref, x_ref, attr_ref, rb_ref,
                      wpre_ref, w1_ref, w2_ref, wpost_ref,
                      wc_ref, wres_ref, wpostL_ref, out_ref):
    f32 = jnp.float32
    bf16 = jnp.bfloat16

    x = x_ref[...]          # [N, C] f32
    attrs = attr_ref[...]   # [N, A] f32

    # ---- pre_linear (1/sqrt(C) folded into the bf16 weight) ----
    h = jnp.dot(x.astype(bf16), wpre_ref[...], preferred_element_type=f32)            # [N, C]

    # ---- radial-weight MLP (bias=False); Y_00 folded into w2 ----
    hid = jnp.dot(rb_ref[...].astype(bf16), w1_ref[...], preferred_element_type=f32)  # [E, H]
    hid = hid * jax.nn.sigmoid(hid)                                                    # SiLU, f32
    tp_w = jnp.dot(hid.astype(bf16), w2_ref[...], preferred_element_type=f32)          # [E, C]

    # ---- gather -> uvu tensor product (l=0) -> scatter-sum, all on the MXU ----
    # senders arrive as [E,1] and receivers as [1,E] so both one-hot matrices are built
    # without any in-kernel transpose. Invalid / padded indices (<0 or >=N) match no iota
    # entry -> all-zero one-hot row -> zero contribution (no clamping artifacts).
    send = send_ref[...]                                                  # [E, 1] int32
    recv = recv_ref[...]                                                  # [1, E] int32
    onehot_send = (jax.lax.broadcasted_iota(jnp.int32, (N_EDGES, N_ATOMS), 1)
                   == send).astype(f32)                                   # [E, N]
    onehot_recv_t = (jax.lax.broadcasted_iota(jnp.int32, (N_ATOMS, N_EDGES), 0)
                     == recv).astype(f32)                                 # [N, E]
    neigh = jnp.dot(onehot_send, h, preferred_element_type=f32)           # [E, C] == h[send]
    msg = neigh * tp_w                                                    # channel-wise (uvu) TP
    tot = jnp.dot(onehot_recv_t, msg, preferred_element_type=f32)         # [N, C] scatter-sum

    # ---- post_linear (1/sqrt(C) folded) ----
    inter = jnp.dot(tot.astype(bf16), wpost_ref[...], preferred_element_type=f32)      # [N, C]

    # ---- symmetric contraction (l=0), correlation = CORRELATION ----
    # stacked (corr, A, C) weights, static leading-axis index -> no lane-offset slices.
    attrs_b = attrs.astype(bf16)
    c = jnp.dot(attrs_b, wc_ref[CORRELATION - 1], preferred_element_type=f32) * inter
    for k in range(CORRELATION - 2, -1, -1):
        c = (c + jnp.dot(attrs_b, wc_ref[k], preferred_element_type=f32)) * inter

    # ---- residual FCTP (C x 0e ⊗ A x 0e -> C x 0e), one K=A*C matmul ----
    # TODO(synk): at realistic N, select the per-species [C,C] weight block via scalar-prefetched
    #             species indices instead of materializing xa (drops A lane-broadcasts and the
    #             redundant MXU work on one-hot attributes).
    xa = jnp.concatenate([x * attrs[:, a:a + 1] for a in range(N_ATTRS)], axis=1)      # [N, A*C]
    upd = jnp.dot(xa.astype(bf16), wres_ref[...], preferred_element_type=f32)          # [N, C]

    # ---- final linear (1/sqrt(C) folded) ----
    out_ref[...] = jnp.dot((c + upd).astype(bf16), wpostL_ref[...],
                           preferred_element_type=f32)


# ----------------------------- BlockSpec helpers -----------------------------
def _per_graph_spec(*tail):
    nd = len(tail)
    return pl.BlockSpec((None,) + tuple(tail), lambda b: (b,) + (0,) * nd)


def _shared_spec(*shape):
    nd = len(shape)
    return pl.BlockSpec(tuple(shape), lambda b: (0,) * nd)


# ----------------------------- wrapper -----------------------------
@jax.jit
def mace_layer_forward(node_features, node_attributes, radial_basis,
                       senders, receivers, params):
    B = node_features.shape[0]
    # layout plumbing in the wrapper (no in-kernel transposes needed):
    send_col = senders.astype(jnp.int32).reshape(B, N_EDGES, 1)    # compare against lane iota
    recv_row = receivers.astype(jnp.int32).reshape(B, 1, N_EDGES)  # compare against sublane iota

    grid_spec = pl.GridSpec(
        grid=(B,),
        in_specs=[
            _per_graph_spec(N_EDGES, 1),                   # senders   [E,1] int32
            _per_graph_spec(1, N_EDGES),                   # receivers [1,E] int32
            _per_graph_spec(N_ATOMS, CHANNELS),            # node features
            _per_graph_spec(N_ATOMS, N_ATTRS),             # node attributes
            _per_graph_spec(N_EDGES, RADIAL),              # radial basis
            _shared_spec(CHANNELS, CHANNELS),              # w_pre   (1/sqrt(C) folded, bf16)
            _shared_spec(RADIAL, MLP_HIDDEN),              # w_mlp1
            _shared_spec(MLP_HIDDEN, CHANNELS),            # w_mlp2  (Y_00 folded)
            _shared_spec(CHANNELS, CHANNELS),              # w_post  (1/sqrt(C) folded)
            _shared_spec(CORRELATION, N_ATTRS, CHANNELS),  # symmetric-contraction weights
            _shared_spec(N_ATTRS * CHANNELS, CHANNELS),    # residual FCTP weights (1/sqrt(CA) folded)
            _shared_spec(CHANNELS, CHANNELS),              # w_postL (1/sqrt(C) folded)
        ],
        out_specs=_per_graph_spec(N_ATOMS, CHANNELS),
    )
    return pl.pallas_call(
        mace_graph_kernel,
        out_shape=jax.ShapeDtypeStruct((B, N_ATOMS, CHANNELS), jnp.float32),
        grid_spec=grid_spec,
        compiler_params=pltpu.CompilerParams(
            # graphs are independent -> megacore sharding on v7x, harmless on v5e/v6e
            dimension_semantics=("parallel",)),
    )(send_col, recv_row, node_features, node_attributes, radial_basis,
      params["w_pre"], params["w_mlp1"], params["w_mlp2"], params["w_post"],
      params["w_contr"], params["w_res_flat"], params["w_postL"])


# ----------------------------- params (constant-folded at init, bf16 MXU operands) -----------------------------
def init_params(key):
    ks = jax.random.split(key, 7)
    f32 = jnp.float32
    w_pre = jax.random.normal(ks[0], (CHANNELS, CHANNELS), f32) * INV_SQRT_C
    w_mlp1 = jax.random.normal(ks[1], (RADIAL, MLP_HIDDEN), f32) / math.sqrt(RADIAL)
    w_mlp2 = jax.random.normal(ks[2], (MLP_HIDDEN, CHANNELS), f32) / math.sqrt(MLP_HIDDEN) * Y_00
    w_post = jax.random.normal(ks[3], (CHANNELS, CHANNELS), f32) * INV_SQRT_C
    w_contr = jax.random.normal(ks[4], (CORRELATION, N_ATTRS, CHANNELS), f32)
    w_res = jax.random.normal(ks[5], (N_ATTRS, CHANNELS, CHANNELS), f32)
    w_postL = jax.random.normal(ks[6], (CHANNELS, CHANNELS), f32) * INV_SQRT_C
    params = {
        "w_pre": w_pre,
        "w_mlp1": w_mlp1,
        "w_mlp2": w_mlp2,
        "w_post": w_post,
        "w_contr": w_contr,                                                        # [corr, A, C]
        "w_res_flat": w_res.reshape(N_ATTRS * CHANNELS, CHANNELS) * INV_SQRT_CA,   # [A*C, C]
        "w_postL": w_postL,
    }
    # bf16 MXU operands (native on v6e/v7x); f32 accumulation is kept inside the kernel.
    return {k: v.astype(jnp.bfloat16) for k, v in params.items()}


# ----------------------------- pure-JAX reference (indexed gather + segment-sum) -----------------------------
def mace_reference(node_features, node_attributes, radial_basis, senders, receivers, params):
    f32, bf16 = jnp.float32, jnp.bfloat16

    def dot(a, w):
        return jnp.dot(a.astype(bf16), w, preferred_element_type=f32)

    def one_graph(x, attrs, rb, send, recv):
        h = dot(x, params["w_pre"])
        hid = dot(rb, params["w_mlp1"])
        hid = hid * jax.nn.sigmoid(hid)
        tp_w = dot(hid, params["w_mlp2"])
        valid = (send >= 0) & (send < N_ATOMS) & (recv >= 0) & (recv < N_ATOMS)
        neigh = jnp.take(h, jnp.clip(send, 0, N_ATOMS - 1), axis=0)
        msg = jnp.where(valid[:, None], neigh * tp_w, 0.0)
        tot = jax.ops.segment_sum(msg, jnp.clip(recv, 0, N_ATOMS - 1), num_segments=N_ATOMS)
        inter = dot(tot, params["w_post"])
        c = dot(attrs, params["w_contr"][CORRELATION - 1]) * inter
        for k in range(CORRELATION - 2, -1, -1):
            c = (c + dot(attrs, params["w_contr"][k])) * inter
        xa = jnp.concatenate([x * attrs[:, a:a + 1] for a in range(N_ATTRS)], axis=1)
        upd = dot(xa, params["w_res_flat"])
        return dot(c + upd, params["w_postL"])

    return jax.vmap(one_graph)(node_features, node_attributes, radial_basis, senders, receivers)


if __name__ == "__main__":
    key = jax.random.PRNGKey(0)
    k_feat, k_rb, k_par = jax.random.split(key, 3)

    node_features = jax.random.normal(k_feat, (B_GRAPHS, N_ATOMS, CHANNELS), jnp.float32)
    species = (jnp.arange(B_GRAPHS * N_ATOMS, dtype=jnp.int32) % N_ATTRS).reshape(B_GRAPHS, N_ATOMS)
    node_attributes = jax.nn.one_hot(species, N_ATTRS, dtype=jnp.float32)
    radial_basis = jax.random.normal(k_rb, (B_GRAPHS, N_EDGES, RADIAL), jnp.float32)

    e = jnp.arange(N_EDGES, dtype=jnp.int32)
    senders = jnp.stack([(e + b) % N_ATOMS for b in range(B_GRAPHS)])
    receivers = jnp.stack([(3 * e + 1 + b) % N_ATOMS for b in range(B_GRAPHS)])
    # demonstrate edge padding: the last two edges of graph 0 are invalid (-1) and must
    # contribute nothing — the one-hot construction drops them automatically.
    senders = senders.at[0, -2:].set(-1)
    receivers = receivers.at[0, -2:].set(-1)

    params = init_params(k_par)

    out = mace_layer_forward(node_features, node_attributes, radial_basis,
                             senders, receivers, params)
    jax.block_until_ready(out)
    assert out.shape == (B_GRAPHS, N_ATOMS, CHANNELS) and out.dtype == jnp.float32

    ref = mace_reference(node_features, node_attributes, radial_basis,
                         senders, receivers, params)
    np.testing.assert_allclose(np.asarray(out), np.asarray(ref), rtol=2e-2, atol=2e-2)
    print("KERNEL_OK")
</pallas_src>

<mosaic_0001>
module attributes {stable_mosaic.version = 11 : i64} {
  func.func @mace_graph_kernel(%arg0: i32, %arg1: memref<1x16x1xi32, #tpu.memory_space<vmem>>, %arg2: memref<1x1x16xi32, #tpu.memory_space<vmem>>, %arg3: memref<1x8x32xf32, #tpu.memory_space<vmem>>, %arg4: memref<1x8x4xf32, #tpu.memory_space<vmem>>, %arg5: memref<1x16x8xf32, #tpu.memory_space<vmem>>, %arg6: memref<32x32xbf16, #tpu.memory_space<vmem>>, %arg7: memref<8x16xbf16, #tpu.memory_space<vmem>>, %arg8: memref<16x32xbf16, #tpu.memory_space<vmem>>, %arg9: memref<32x32xbf16, #tpu.memory_space<vmem>>, %arg10: memref<3x4x32xbf16, #tpu.memory_space<vmem>>, %arg11: memref<128x32xbf16, #tpu.memory_space<vmem>>, %arg12: memref<32x32xbf16, #tpu.memory_space<vmem>>, %arg13: memref<1x8x32xf32, #tpu.memory_space<vmem>>) attributes {dimension_semantics = [#tpu.dimension_semantics<parallel>], iteration_bounds = array<i64: 4>, scalar_prefetch = 0 : i64, scratch_operands = 0 : i64, tpu.core_type = #tpu.core_type<tc>, window_params = [{transform_indices = @transform_0, window_bounds = array<i64: 1, 16, 1>}, {transform_indices = @transform_1, window_bounds = array<i64: 1, 1, 16>}, {transform_indices = @transform_2, window_bounds = array<i64: 1, 8, 32>}, {transform_indices = @transform_3, window_bounds = array<i64: 1, 8, 4>}, {transform_indices = @transform_4, window_bounds = array<i64: 1, 16, 8>}, {pipeline_mode = #tpu.pipeline_mode<synchronous>, transform_indices = @transform_5, window_bounds = array<i64: 32, 32>}, {pipeline_mode = #tpu.pipeline_mode<synchronous>, transform_indices = @transform_6, window_bounds = array<i64: 8, 16>}, {pipeline_mode = #tpu.pipeline_mode<synchronous>, transform_indices = @transform_7, window_bounds = array<i64: 16, 32>}, {pipeline_mode = #tpu.pipeline_mode<synchronous>, transform_indices = @transform_8, window_bounds = array<i64: 32, 32>}, {pipeline_mode = #tpu.pipeline_mode<synchronous>, transform_indices = @transform_9, window_bounds = array<i64: 3, 4, 32>}, {pipeline_mode = #tpu.pipeline_mode<synchronous>, transform_indices = @transform_10, window_bounds = array<i64: 128, 32>}, {pipeline_mode = #tpu.pipeline_mode<synchronous>, transform_indices = @transform_11, window_bounds = array<i64: 32, 32>}, {transform_indices = @transform_12, window_bounds = array<i64: 1, 8, 32>}]} {
    %c0 = arith.constant 0 : index
    %c0_0 = arith.constant 0 : index
    %c0_1 = arith.constant 0 : index
    %0 = vector.load %arg3[%c0, %c0_0, %c0_1] : memref<1x8x32xf32, #tpu.memory_space<vmem>>, vector<1x8x32xf32>
    %1 = vector.shape_cast %0 : vector<1x8x32xf32> to vector<8x32xf32>
    %c0_2 = arith.constant 0 : index
    %c0_3 = arith.constant 0 : index
    %c0_4 = arith.constant 0 : index
    %2 = vector.load %arg4[%c0_2, %c0_3, %c0_4] : memref<1x8x4xf32, #tpu.memory_space<vmem>>, vector<1x8x4xf32>
    %3 = vector.shape_cast %2 : vector<1x8x4xf32> to vector<8x4xf32>
    %4 = arith.truncf %1 : vector<8x32xf32> to vector<8x32xbf16>
    %c0_5 = arith.constant 0 : index
    %c0_6 = arith.constant 0 : index
    %5 = vector.load %arg6[%c0_5, %c0_6] : memref<32x32xbf16, #tpu.memory_space<vmem>>, vector<32x32xbf16>
    %cst = arith.constant dense<0.000000e+00> : vector<8x32xf32>
    %6 = tpu.matmul %4, %5, %cst {dimension_numbers = #tpu.dot_dimension_numbers<[1], [0], [0], [1], [0, 0, 1, 1], [], []>} : vector<8x32xbf16>, vector<32x32xbf16>, vector<8x32xf32> -> vector<8x32xf32>
    %c0_7 = arith.constant 0 : index
    %c0_8 = arith.constant 0 : index
    %c0_9 = arith.constant 0 : index
    %7 = vector.load %arg5[%c0_7, %c0_8, %c0_9] : memref<1x16x8xf32, #tpu.memory_space<vmem>>, vector<1x16x8xf32>
    %8 = vector.shape_cast %7 : vector<1x16x8xf32> to vector<16x8xf32>
    %9 = arith.truncf %8 : vector<16x8xf32> to vector<16x8xbf16>
    %c0_10 = arith.constant 0 : index
    %c0_11 = arith.constant 0 : index
    %10 = vector.load %arg7[%c0_10, %c0_11] : memref<8x16xbf16, #tpu.memory_space<vmem>>, vector<8x16xbf16>
    %cst_12 = arith.constant dense<0.000000e+00> : vector<16x16xf32>
    %11 = tpu.matmul %9, %10, %cst_12 {dimension_numbers = #tpu.dot_dimension_numbers<[1], [0], [0], [1], [0, 0, 1, 1], [], []>} : vector<16x8xbf16>, vector<8x16xbf16>, vector<16x16xf32> -> vector<16x16xf32>
    %12 = arith.negf %11 : vector<16x16xf32>
    %13 = math.exp %12 : vector<16x16xf32>
    %cst_13 = arith.constant 1.000000e+00 : f32
    %14 = vector.broadcast %cst_13 : f32 to vector<16x16xf32>
    %15 = arith.addf %14, %13 : vector<16x16xf32>
    %16 = arith.divf %14, %15 : vector<16x16xf32>
    %17 = arith.mulf %11, %16 : vector<16x16xf32>
    %18 = arith.truncf %17 : vector<16x16xf32> to vector<16x16xbf16>
    %c0_14 = arith.constant 0 : index
    %c0_15 = arith.constant 0 : index
    %19 = vector.load %arg8[%c0_14, %c0_15] : memref<16x32xbf16, #tpu.memory_space<vmem>>, vector<16x32xbf16>
    %cst_16 = arith.constant dense<0.000000e+00> : vector<16x32xf32>
    %20 = tpu.matmul %18, %19, %cst_16 {dimension_numbers = #tpu.dot_dimension_numbers<[1], [0], [0], [1], [0, 0, 1, 1], [], []>} : vector<16x16xbf16>, vector<16x32xbf16>, vector<16x32xf32> -> vector<16x32xf32>
    %c0_17 = arith.constant 0 : index
    %c0_18 = arith.constant 0 : index
    %c0_19 = arith.constant 0 : index
    %21 = vector.load %arg1[%c0_17, %c0_18, %c0_19] : memref<1x16x1xi32, #tpu.memory_space<vmem>>, vector<1x16x1xi32>
    %22 = vector.shape_cast %21 : vector<1x16x1xi32> to vector<16x1xi32>
    %c0_20 = arith.constant 0 : index
    %c0_21 = arith.constant 0 : index
    %c0_22 = arith.constant 0 : index
    %23 = vector.load %arg2[%c0_20, %c0_21, %c0_22] : memref<1x1x16xi32, #tpu.memory_space<vmem>>, vector<1x1x16xi32>
    %24 = vector.shape_cast %23 : vector<1x1x16xi32> to vector<1x16xi32>
    %25 = tpu.iota {dimensions = array<i32: 1>} : vector<16x8xi32>
    %26 = vector.broadcast %22 : vector<16x1xi32> to vector<16x8xi32>
    %27 = arith.cmpi eq, %25, %26 : vector<16x8xi32>
    %28 = arith.extui %27 : vector<16x8xi1> to vector<16x8xi32>
    %29 = arith.sitofp %28 : vector<16x8xi32> to vector<16x8xf32>
    %30 = tpu.iota {dimensions = array<i32: 0>} : vector<8x16xi32>
    %31 = vector.broadcast %24 : vector<1x16xi32> to vector<8x16xi32>
    %32 = arith.cmpi eq, %30, %31 : vector<8x16xi32>
    %33 = arith.extui %32 : vector<8x16xi1> to vector<8x16xi32>
    %34 = arith.sitofp %33 : vector<8x16xi32> to vector<8x16xf32>
    %cst_23 = arith.constant dense<0.000000e+00> : vector<16x32xf32>
    %35 = tpu.matmul %29, %6, %cst_23 {dimension_numbers = #tpu.dot_dimension_numbers<[1], [0], [0], [1], [0, 0, 1, 1], [], []>} : vector<16x8xf32>, vector<8x32xf32>, vector<16x32xf32> -> vector<16x32xf32>
    %36 = arith.mulf %35, %20 : vector<16x32xf32>
    %cst_24 = arith.constant dense<0.000000e+00> : vector<8x32xf32>
    %37 = tpu.matmul %34, %36, %cst_24 {dimension_numbers = #tpu.dot_dimension_numbers<[1], [0], [0], [1], [0, 0, 1, 1], [], []>} : vector<8x16xf32>, vector<16x32xf32>, vector<8x32xf32> -> vector<8x32xf32>
    %38 = arith.truncf %37 : vector<8x32xf32> to vector<8x32xbf16>
    %c0_25 = arith.constant 0 : index
    %c0_26 = arith.constant 0 : index
    %39 = vector.load %arg9[%c0_25, %c0_26] : memref<32x32xbf16, #tpu.memory_space<vmem>>, vector<32x32xbf16>
    %cst_27 = arith.constant dense<0.000000e+00> : vector<8x32xf32>
    %40 = tpu.matmul %38, %39, %cst_27 {dimension_numbers = #tpu.dot_dimension_numbers<[1], [0], [0], [1], [0, 0, 1, 1], [], []>} : vector<8x32xbf16>, vector<32x32xbf16>, vector<8x32xf32> -> vector<8x32xf32>
    %41 = arith.truncf %3 : vector<8x4xf32> to vector<8x4xbf16>
    %c2 = arith.constant 2 : index
    %c0_28 = arith.constant 0 : index
    %c0_29 = arith.constant 0 : index
    %42 = vector.load %arg10[%c2, %c0_28, %c0_29] : memref<3x4x32xbf16, #tpu.memory_space<vmem>>, vector<1x4x32xbf16>
    %43 = vector.shape_cast %42 : vector<1x4x32xbf16> to vector<4x32xbf16>
    %cst_30 = arith.constant dense<0.000000e+00> : vector<8x32xf32>
    %44 = tpu.matmul %41, %43, %cst_30 {dimension_numbers = #tpu.dot_dimension_numbers<[1], [0], [0], [1], [0, 0, 1, 1], [], []>} : vector<8x4xbf16>, vector<4x32xbf16>, vector<8x32xf32> -> vector<8x32xf32>
    %45 = arith.mulf %44, %40 : vector<8x32xf32>
    %c1 = arith.constant 1 : index
    %c0_31 = arith.constant 0 : index
    %c0_32 = arith.constant 0 : index
    %46 = vector.load %arg10[%c1, %c0_31, %c0_32] : memref<3x4x32xbf16, #tpu.memory_space<vmem>>, vector<1x4x32xbf16>
    %47 = vector.shape_cast %46 : vector<1x4x32xbf16> to vector<4x32xbf16>
    %cst_33 = arith.constant dense<0.000000e+00> : vector<8x32xf32>
    %48 = tpu.matmul %41, %47, %cst_33 {dimension_numbers = #tpu.dot_dimension_numbers<[1], [0], [0], [1], [0, 0, 1, 1], [], []>} : vector<8x4xbf16>, vector<4x32xbf16>, vector<8x32xf32> -> vector<8x32xf32>
    %49 = arith.addf %45, %48 : vector<8x32xf32>
    %50 = arith.mulf %49, %40 : vector<8x32xf32>
    %c0_34 = arith.constant 0 : index
    %c0_35 = arith.constant 0 : index
    %c0_36 = arith.constant 0 : index
    %51 = vector.load %arg10[%c0_34, %c0_35, %c0_36] : memref<3x4x32xbf16, #tpu.memory_space<vmem>>, vector<1x4x32xbf16>
    %52 = vector.shape_cast %51 : vector<1x4x32xbf16> to vector<4x32xbf16>
    %cst_37 = arith.constant dense<0.000000e+00> : vector<8x32xf32>
    %53 = tpu.matmul %41, %52, %cst_37 {dimension_numbers = #tpu.dot_dimension_numbers<[1], [0], [0], [1], [0, 0, 1, 1], [], []>} : vector<8x4xbf16>, vector<4x32xbf16>, vector<8x32xf32> -> vector<8x32xf32>
    %54 = arith.addf %50, %53 : vector<8x32xf32>
    %55 = arith.mulf %54, %40 : vector<8x32xf32>
    %56 = vector.extract_strided_slice %3 {offsets = [0, 0], sizes = [8, 1], strides = [1, 1]} : vector<8x4xf32> to vector<8x1xf32>
    %57 = vector.broadcast %56 : vector<8x1xf32> to vector<8x32xf32>
    %58 = arith.mulf %1, %57 : vector<8x32xf32>
    %59 = vector.extract_strided_slice %3 {offsets = [0, 1], sizes = [8, 1], strides = [1, 1]} : vector<8x4xf32> to vector<8x1xf32>
    %60 = vector.broadcast %59 : vector<8x1xf32> to vector<8x32xf32>
    %61 = arith.mulf %1, %60 : vector<8x32xf32>
    %62 = vector.extract_strided_slice %3 {offsets = [0, 2], sizes = [8, 1], strides = [1, 1]} : vector<8x4xf32> to vector<8x1xf32>
    %63 = vector.broadcast %62 : vector<8x1xf32> to vector<8x32xf32>
    %64 = arith.mulf %1, %63 : vector<8x32xf32>
    %65 = vector.extract_strided_slice %3 {offsets = [0, 3], sizes = [8, 1], strides = [1, 1]} : vector<8x4xf32> to vector<8x1xf32>
    %66 = vector.broadcast %65 : vector<8x1xf32> to vector<8x32xf32>
    %67 = arith.mulf %1, %66 : vector<8x32xf32>
    %68 = tpu.concatenate %58, %61, %64, %67 in 1 : vector<8x32xf32>, vector<8x32xf32>, vector<8x32xf32>, vector<8x32xf32> -> vector<8x128xf32>
    %69 = arith.truncf %68 : vector<8x128xf32> to vector<8x128xbf16>
    %c0_38 = arith.constant 0 : index
    %c0_39 = arith.constant 0 : index
    %70 = vector.load %arg11[%c0_38, %c0_39] : memref<128x32xbf16, #tpu.memory_space<vmem>>, vector<128x32xbf16>
    %cst_40 = arith.constant dense<0.000000e+00> : vector<8x32xf32>
    %71 = tpu.matmul %69, %70, %cst_40 {dimension_numbers = #tpu.dot_dimension_numbers<[1], [0], [0], [1], [0, 0, 1, 1], [], []>} : vector<8x128xbf16>, vector<128x32xbf16>, vector<8x32xf32> -> vector<8x32xf32>
    %72 = arith.addf %55, %71 : vector<8x32xf32>
    %73 = arith.truncf %72 : vector<8x32xf32> to vector<8x32xbf16>
    %c0_41 = arith.constant 0 : index
    %c0_42 = arith.constant 0 : index
    %74 = vector.load %arg12[%c0_41, %c0_42] : memref<32x32xbf16, #tpu.memory_space<vmem>>, vector<32x32xbf16>
    %cst_43 = arith.constant dense<0.000000e+00> : vector<8x32xf32>
    %75 = tpu.matmul %73, %74, %cst_43 {dimension_numbers = #tpu.dot_dimension_numbers<[1], [0], [0], [1], [0, 0, 1, 1], [], []>} : vector<8x32xbf16>, vector<32x32xbf16>, vector<8x32xf32> -> vector<8x32xf32>
    %c0_44 = arith.constant 0 : index
    %c0_45 = arith.constant 0 : index
    %c0_46 = arith.constant 0 : index
    %76 = vector.load %arg13[%c0_44, %c0_45, %c0_46] : memref<1x8x32xf32, #tpu.memory_space<vmem>>, vector<1x8x32xf32>
    %77 = vector.shape_cast %76 : vector<1x8x32xf32> to vector<8x32xf32>
    %78 = vector.shape_cast %75 : vector<8x32xf32> to vector<1x8x32xf32>
    tpu.vector_store %arg13[%c0_44, %c0_45, %c0_46], %78 {strides = array<i32>} : memref<1x8x32xf32, #tpu.memory_space<vmem>>, vector<1x8x32xf32>,
    return
  }
  func.func @transform_0(%arg0: i32) -> (i32, i32, i32) {
    %c0_i32 = arith.constant 0 : i32
    %c0_i32_0 = arith.constant 0 : i32
    %c0_i32_1 = arith.constant 0 : i32
    return %arg0, %c0_i32, %c0_i32_0 : i32, i32, i32
  }
  func.func @transform_1(%arg0: i32) -> (i32, i32, i32) {
    %c0_i32 = arith.constant 0 : i32
    %c0_i32_0 = arith.constant 0 : i32
    %c0_i32_1 = arith.constant 0 : i32
    return %arg0, %c0_i32, %c0_i32_0 : i32, i32, i32
  }
  func.func @transform_2(%arg0: i32) -> (i32, i32, i32) {
    %c0_i32 = arith.constant 0 : i32
    %c0_i32_0 = arith.constant 0 : i32
    %c0_i32_1 = arith.constant 0 : i32
    return %arg0, %c0_i32, %c0_i32_0 : i32, i32, i32
  }
  func.func @transform_3(%arg0: i32) -> (i32, i32, i32) {
    %c0_i32 = arith.constant 0 : i32
    %c0_i32_0 = arith.constant 0 : i32
    %c0_i32_1 = arith.constant 0 : i32
    return %arg0, %c0_i32, %c0_i32_0 : i32, i32, i32
  }
  func.func @transform_4(%arg0: i32) -> (i32, i32, i32) {
    %c0_i32 = arith.constant 0 : i32
    %c0_i32_0 = arith.constant 0 : i32
    %c0_i32_1 = arith.constant 0 : i32
    return %arg0, %c0_i32, %c0_i32_0 : i32, i32, i32
  }
  func.func @transform_5(%arg0: i32) -> (i32, i32) {
    %c0_i32 = arith.constant 0 : i32
    %c0_i32_0 = arith.constant 0 : i32
    %c0_i32_1 = arith.constant 0 : i32
    return %c0_i32, %c0_i32_0 : i32, i32
  }
  func.func @transform_6(%arg0: i32) -> (i32, i32) {
    %c0_i32 = arith.constant 0 : i32
    %c0_i32_0 = arith.constant 0 : i32
    %c0_i32_1 = arith.constant 0 : i32
    return %c0_i32, %c0_i32_0 : i32, i32
  }
  func.func @transform_7(%arg0: i32) -> (i32, i32) {
    %c0_i32 = arith.constant 0 : i32
    %c0_i32_0 = arith.constant 0 : i32
    %c0_i32_1 = arith.constant 0 : i32
    return %c0_i32, %c0_i32_0 : i32, i32
  }
  func.func @transform_8(%arg0: i32) -> (i32, i32) {
    %c0_i32 = arith.constant 0 : i32
    %c0_i32_0 = arith.constant 0 : i32
    %c0_i32_1 = arith.constant 0 : i32
    return %c0_i32, %c0_i32_0 : i32, i32
  }
  func.func @transform_9(%arg0: i32) -> (i32, i32, i32) {
    %c0_i32 = arith.constant 0 : i32
    %c0_i32_0 = arith.constant 0 : i32
    %c0_i32_1 = arith.constant 0 : i32
    %c0_i32_2 = arith.constant 0 : i32
    return %c0_i32, %c0_i32_0, %c0_i32_1 : i32, i32, i32
  }
  func.func @transform_10(%arg0: i32) -> (i32, i32) {
    %c0_i32 = arith.constant 0 : i32
    %c0_i32_0 = arith.constant 0 : i32
    %c0_i32_1 = arith.constant 0 : i32
    return %c0_i32, %c0_i32_0 : i32, i32
  }
  func.func @transform_11(%arg0: i32) -> (i32, i32) {
    %c0_i32 = arith.constant 0 : i32
    %c0_i32_0 = arith.constant 0 : i32
    %c0_i32_1 = arith.constant 0 : i32
    return %c0_i32, %c0_i32_0 : i32, i32
  }
  func.func @transform_12(%arg0: i32) -> (i32, i32, i32) {
    %c0_i32 = arith.constant 0 : i32
    %c0_i32_0 = arith.constant 0 : i32
    %c0_i32_1 = arith.constant 0 : i32
    return %arg0, %c0_i32, %c0_i32_0 : i32, i32, i32
  }
}

</mosaic_0001>

<llo_original>
// kernel: mace_layer_forward.1
$region0: #{mace_layer_forward.1}
  #allocation0 [shape = 'u32[]', space=smem, size = 0x4, offset = 0x4, fixed_abs, tag = 'smem constant byte address 0x4 - core index']
  #allocation1 [shape = 'u32[72,128]{1,0:T(1,128)}', space=vmem, size = 0x9000, scoped, tag = 'internal scratch']
  %s0 = inlined_call_operand.vmem [shape: s32[4,16,1], index: 0, kind: input, shape index: {}]
  %s1 = inlined_call_operand.vmem [shape: s32[4,1,16], index: 1, kind: input, shape index: {}]
  %s2 = inlined_call_operand.vmem [shape: f32[4,8,32], index: 2, kind: input, shape index: {}]
  %s3 = inlined_call_operand.vmem [shape: f32[4,8,4], index: 3, kind: input, shape index: {}]
  %s4 = inlined_call_operand.vmem [shape: f32[4,16,8], index: 4, kind: input, shape index: {}]
  %s5 = inlined_call_operand.vmem [shape: bf16[32,32], index: 5, kind: input, shape index: {}]
  %s6 = inlined_call_operand.vmem [shape: bf16[8,16], index: 6, kind: input, shape index: {}]
  %s7 = inlined_call_operand.vmem [shape: bf16[16,32], index: 7, kind: input, shape index: {}]
  %s8 = inlined_call_operand.vmem [shape: bf16[32,32], index: 8, kind: input, shape index: {}]
  %s9 = inlined_call_operand.vmem [shape: bf16[3,4,32], index: 9, kind: input, shape index: {}]
  %s10 = inlined_call_operand.vmem [shape: bf16[128,32], index: 10, kind: input, shape index: {}]
  %s11 = inlined_call_operand.vmem [shape: bf16[32,32], index: 11, kind: input, shape index: {}]
  %s12 = inlined_call_operand.hbm [shape: f32[4,8,32], index: 12, kind: output, shape index: {}]
  %s13 = sld [smem:[#allocation0]]
  $region81: #{mace_layer_forward.1} parent=0
    _
  %s15 = ssub.s32 1, %s13
  %s16 = scalar_select 0, %s15, %s13
  $region1: #{mace_layer_forward.1} parent=0
    #allocation2 [shape = 'u8[8192]{0}', space=vmem, size = 0x2000, scoped, tag = 'output window, operand 0']
    #allocation3 [shape = 's32[2]{0}', space=sflag, size = 0x8, scoped, tag = 'scoped memory for mace_layer_forward.1']
    %17 = vsyncpa [#allocation3], 0
    %s18 = scalar_lea.sflag [#allocation3], 1
    %19 = vsyncpa %s18, 0
    loop: start=0, step=1, limit=6
    $region2: #{mace_layer_forward.1} parent=1 // loop_pre_header
      _
    $region3: #{mace_layer_forward.1} parent=1 // loop_header
      %s21 = sphi 0, %s25
      %p22 = scmp.ge.s32.totalorder %s21, 6
      %s31 = sphi 0, %s33
      %s34 = sphi 0, %s31
      %s35 = sphi 0, %s34
      %s51 = sphi 0, %s35
      %s57 = sphi 0, %s59
      %s60 = sphi 0, %s57
      %s61 = sphi 0, %s60
      %s77 = sphi 0, %s61
      %s83 = sphi 0, %s85
      %s86 = sphi 0, %s83
      %s87 = sphi 0, %s86
      %s103 = sphi 0, %s87
      %s109 = sphi 0, %s111
      %s112 = sphi 0, %s109
      %s113 = sphi 0, %s112
      %s129 = sphi 0, %s113
      %s135 = sphi 0, %s137
      %s138 = sphi 0, %s135
      %s139 = sphi 0, %s138
      %s155 = sphi 0, %s139
      %s159 = sphi 0, %s159
      %s161 = sphi 0, %s159
      %s162 = sphi 0, %s161
      %s176 = sphi 0, %s162
      %s180 = sphi 0, %s180
      %s182 = sphi 0, %s180
      %s183 = sphi 0, %s182
      %s197 = sphi 0, %s183
      %s201 = sphi 0, %s201
      %s203 = sphi 0, %s201
      %s204 = sphi 0, %s203
      %s218 = sphi 0, %s204
      %s222 = sphi 0, %s222
      %s224 = sphi 0, %s222
      %s225 = sphi 0, %s224
      %s239 = sphi 0, %s225
      %s243 = sphi 0, %s243
      %s245 = sphi 0, %s243
      %s246 = sphi 0, %s245
      %s260 = sphi 0, %s246
      %s264 = sphi 0, %s264
      %s266 = sphi 0, %s264
      %s267 = sphi 0, %s266
      %s281 = sphi 0, %s267
      %s285 = sphi 0, %s285
      %s287 = sphi 0, %s285
      %s288 = sphi 0, %s287
      %s302 = sphi 0, %s288
      %s308 = sphi 0, %s310
      %s311 = sphi 0, %s308
      %s312 = sphi 0, %s311
      %s328 = sphi 0, %s312
    $region4: #{mace_layer_forward.1} parent=1 // loop_header_branch
      %24 = sbr.rel (%p22) target = $region8
    $region5: #{mace_layer_forward.1} parent=1 // loop_body
      %s26 = ssub.s32 %s21, 1
      %s27 = ssub.s32 %s21, 2
      %s28 = sadd.s32 %s21, 1
      %s29 = ssub.s32 %s21, %s28
      %p30 = scmp.eq.s32.totalorder %s29, 0
      %s32 = sadd.s32 %s31, 1
      %s33 = scalar_select %p30, %s31, %s32
      %p36 = pneg %p30
      %p37 = scmp.eq.s32.totalorder %s21, 3
      %p38 = por %p36, %p37
      %p39 = scmp.ne.s32.totalorder %s31, %s34
      %p40 = scmp.eq.s32.totalorder %s21, 0
      %p41 = por %p39, %p40
      %p42 = scmp.ne.s32.totalorder %s31, %s34
      %p43 = scmp.eq.s32.totalorder %s26, 3
      %p44 = por %p42, %p43
      %p45 = scmp.ne.s32.totalorder %s34, %s35
      %p46 = scmp.eq.s32.totalorder %s26, 0
      %p47 = por %p45, %p46
      %p48 = scmp.ne.s32.totalorder %s34, %s35
      %p49 = scmp.eq.s32.totalorder %s27, 3
      %p50 = por %p48, %p49
      %p52 = scmp.ne.s32.totalorder %s35, %s51
      %p53 = scmp.eq.s32.totalorder %s27, 0
      %p54 = por %p52, %p53
      %s55 = ssub.s32 %s21, %s28
      %p56 = scmp.eq.s32.totalorder %s55, 0
      %s58 = sadd.s32 %s57, 1
      %s59 = scalar_select %p56, %s57, %s58
      %p62 = pneg %p56
      %p63 = scmp.eq.s32.totalorder %s21, 3
      %p64 = por %p62, %p63
      %p65 = scmp.ne.s32.totalorder %s57, %s60
      %p66 = scmp.eq.s32.totalorder %s21, 0
      %p67 = por %p65, %p66
      %p68 = scmp.ne.s32.totalorder %s57, %s60
      %p69 = scmp.eq.s32.totalorder %s26, 3
      %p70 = por %p68, %p69
      %p71 = scmp.ne.s32.totalorder %s60, %s61
      %p72 = scmp.eq.s32.totalorder %s26, 0
      %p73 = por %p71, %p72
      %p74 = scmp.ne.s32.totalorder %s60, %s61
      %p75 = scmp.eq.s32.totalorder %s27, 3
      %p76 = por %p74, %p75
      %p78 = scmp.ne.s32.totalorder %s61, %s77
      %p79 = scmp.eq.s32.totalorder %s27, 0
      %p80 = por %p78, %p79
      %s81 = ssub.s32 %s21, %s28
      %p82 = scmp.eq.s32.totalorder %s81, 0
      %s84 = sadd.s32 %s83, 1
      %s85 = scalar_select %p82, %s83, %s84
      %p88 = pneg %p82
      %p89 = scmp.eq.s32.totalorder %s21, 3
      %p90 = por %p88, %p89
      %p91 = scmp.ne.s32.totalorder %s83, %s86
      %p92 = scmp.eq.s32.totalorder %s21, 0
      %p93 = por %p91, %p92
      %p94 = scmp.ne.s32.totalorder %s83, %s86
      %p95 = scmp.eq.s32.totalorder %s26, 3
      %p96 = por %p94, %p95
      %p97 = scmp.ne.s32.totalorder %s86, %s87
      %p98 = scmp.eq.s32.totalorder %s26, 0
      %p99 = por %p97, %p98
      %p100 = scmp.ne.s32.totalorder %s86, %s87
      %p101 = scmp.eq.s32.totalorder %s27, 3
      %p102 = por %p100, %p101
      %p104 = scmp.ne.s32.totalorder %s87, %s103
      %p105 = scmp.eq.s32.totalorder %s27, 0
      %p106 = por %p104, %p105
      %s107 = ssub.s32 %s21, %s28
      %p108 = scmp.eq.s32.totalorder %s107, 0
      %s110 = sadd.s32 %s109, 1
      %s111 = scalar_select %p108, %s109, %s110
      %p114 = pneg %p108
      %p115 = scmp.eq.s32.totalorder %s21, 3
      %p116 = por %p114, %p115
      %p117 = scmp.ne.s32.totalorder %s109, %s112
      %p118 = scmp.eq.s32.totalorder %s21, 0
      %p119 = por %p117, %p118
      %p120 = scmp.ne.s32.totalorder %s109, %s112
      %p121 = scmp.eq.s32.totalorder %s26, 3
      %p122 = por %p120, %p121
      %p123 = scmp.ne.s32.totalorder %s112, %s113
      %p124 = scmp.eq.s32.totalorder %s26, 0
      %p125 = por %p123, %p124
      %p126 = scmp.ne.s32.totalorder %s112, %s113
      %p127 = scmp.eq.s32.totalorder %s27, 3
      %p128 = por %p126, %p127
      %p130 = scmp.ne.s32.totalorder %s113, %s129
      %p131 = scmp.eq.s32.totalorder %s27, 0
      %p132 = por %p130, %p131
      %s133 = ssub.s32 %s21, %s28
      %p134 = scmp.eq.s32.totalorder %s133, 0
      %s136 = sadd.s32 %s135, 1
      %s137 = scalar_select %p134, %s135, %s136
      %p140 = pneg %p134
      %p141 = scmp.eq.s32.totalorder %s21, 3
      %p142 = por %p140, %p141
      %p143 = scmp.ne.s32.totalorder %s135, %s138
      %p144 = scmp.eq.s32.totalorder %s21, 0
      %p145 = por %p143, %p144
      %p146 = scmp.ne.s32.totalorder %s135, %s138
      %p147 = scmp.eq.s32.totalorder %s26, 3
      %p148 = por %p146, %p147
      %p149 = scmp.ne.s32.totalorder %s138, %s139
      %p150 = scmp.eq.s32.totalorder %s26, 0
      %p151 = por %p149, %p150
      %p152 = scmp.ne.s32.totalorder %s138, %s139
      %p153 = scmp.eq.s32.totalorder %s27, 3
      %p154 = por %p152, %p153
      %p156 = scmp.ne.s32.totalorder %s139, %s155
      %p157 = scmp.eq.s32.totalorder %s27, 0
      %p158 = por %p156, %p157
      %s160 = sadd.s32 %s159, 1
      %p163 = scmp.eq.s32.totalorder %s21, 3
      %p164 = scmp.ne.s32.totalorder %s159, %s161
      %p165 = scmp.eq.s32.totalorder %s21, 0
      %p166 = por %p164, %p165
      %p167 = scmp.ne.s32.totalorder %s159, %s161
      %p168 = scmp.eq.s32.totalorder %s26, 3
      %p169 = por %p167, %p168
      %p170 = scmp.ne.s32.totalorder %s161, %s162
      %p171 = scmp.eq.s32.totalorder %s26, 0
      %p172 = por %p170, %p171
      %p173 = scmp.ne.s32.totalorder %s161, %s162
      %p174 = scmp.eq.s32.totalorder %s27, 3
      %p175 = por %p173, %p174
      %p177 = scmp.ne.s32.totalorder %s162, %s176
      %p178 = scmp.eq.s32.totalorder %s27, 0
      %p179 = por %p177, %p178
      %s181 = sadd.s32 %s180, 1
      %p184 = scmp.eq.s32.totalorder %s21, 3
      %p185 = scmp.ne.s32.totalorder %s180, %s182
      %p186 = scmp.eq.s32.totalorder %s21, 0
      %p187 = por %p185, %p186
      %p188 = scmp.ne.s32.totalorder %s180, %s182
      %p189 = scmp.eq.s32.totalorder %s26, 3
      %p190 = por %p188, %p189
      %p191 = scmp.ne.s32.totalorder %s182, %s183
      %p192 = scmp.eq.s32.totalorder %s26, 0
      %p193 = por %p191, %p192
      %p194 = scmp.ne.s32.totalorder %s182, %s183
      %p195 = scmp.eq.s32.totalorder %s27, 3
      %p196 = por %p194, %p195
      %p198 = scmp.ne.s32.totalorder %s183, %s197
      %p199 = scmp.eq.s32.totalorder %s27, 0
      %p200 = por %p198, %p199
      %s202 = sadd.s32 %s201, 1
      %p205 = scmp.eq.s32.totalorder %s21, 3
      %p206 = scmp.ne.s32.totalorder %s201, %s203
      %p207 = scmp.eq.s32.totalorder %s21, 0
      %p208 = por %p206, %p207
      %p209 = scmp.ne.s32.totalorder %s201, %s203
      %p210 = scmp.eq.s32.totalorder %s26, 3
      %p211 = por %p209, %p210
      %p212 = scmp.ne.s32.totalorder %s203, %s204
      %p213 = scmp.eq.s32.totalorder %s26, 0
      %p214 = por %p212, %p213
      %p215 = scmp.ne.s32.totalorder %s203, %s204
      %p216 = scmp.eq.s32.totalorder %s27, 3
      %p217 = por %p215, %p216
      %p219 = scmp.ne.s32.totalorder %s204, %s218
      %p220 = scmp.eq.s32.totalorder %s27, 0
      %p221 = por %p219, %p220
      %s223 = sadd.s32 %s222, 1
      %p226 = scmp.eq.s32.totalorder %s21, 3
      %p227 = scmp.ne.s32.totalorder %s222, %s224
      %p228 = scmp.eq.s32.totalorder %s21, 0
      %p229 = por %p227, %p228
      %p230 = scmp.ne.s32.totalorder %s222, %s224
      %p231 = scmp.eq.s32.totalorder %s26, 3
      %p232 = por %p230, %p231
      %p233 = scmp.ne.s32.totalorder %s224, %s225
      %p234 = scmp.eq.s32.totalorder %s26, 0
      %p235 = por %p233, %p234
      %p236 = scmp.ne.s32.totalorder %s224, %s225
      %p237 = scmp.eq.s32.totalorder %s27, 3
      %p238 = por %p236, %p237
      %p240 = scmp.ne.s32.totalorder %s225, %s239
      %p241 = scmp.eq.s32.totalorder %s27, 0
      %p242 = por %p240, %p241
      %s244 = sadd.s32 %s243, 1
      %p247 = scmp.eq.s32.totalorder %s21, 3
      %p248 = scmp.ne.s32.totalorder %s243, %s245
      %p249 = scmp.eq.s32.totalorder %s21, 0
      %p250 = por %p248, %p249
      %p251 = scmp.ne.s32.totalorder %s243, %s245
      %p252 = scmp.eq.s32.totalorder %s26, 3
      %p253 = por %p251, %p252
      %p254 = scmp.ne.s32.totalorder %s245, %s246
      %p255 = scmp.eq.s32.totalorder %s26, 0
      %p256 = por %p254, %p255
      %p257 = scmp.ne.s32.totalorder %s245, %s246
      %p258 = scmp.eq.s32.totalorder %s27, 3
      %p259 = por %p257, %p258
      %p261 = scmp.ne.s32.totalorder %s246, %s260
      %p262 = scmp.eq.s32.totalorder %s27, 0
      %p263 = por %p261, %p262
      %s265 = sadd.s32 %s264, 1
      %p268 = scmp.eq.s32.totalorder %s21, 3
      %p269 = scmp.ne.s32.totalorder %s264, %s266
      %p270 = scmp.eq.s32.totalorder %s21, 0
      %p271 = por %p269, %p270
      %p272 = scmp.ne.s32.totalorder %s264, %s266
      %p273 = scmp.eq.s32.totalorder %s26, 3
      %p274 = por %p272, %p273
      %p275 = scmp.ne.s32.totalorder %s266, %s267
      %p276 = scmp.eq.s32.totalorder %s26, 0
      %p277 = por %p275, %p276
      %p278 = scmp.ne.s32.totalorder %s266, %s267
      %p279 = scmp.eq.s32.totalorder %s27, 3
      %p280 = por %p278, %p279
      %p282 = scmp.ne.s32.totalorder %s267, %s281
      %p283 = scmp.eq.s32.totalorder %s27, 0
      %p284 = por %p282, %p283
      %s286 = sadd.s32 %s285, 1
      %p289 = scmp.eq.s32.totalorder %s21, 3
      %p290 = scmp.ne.s32.totalorder %s285, %s287
      %p291 = scmp.eq.s32.totalorder %s21, 0
      %p292 = por %p290, %p291
      %p293 = scmp.ne.s32.totalorder %s285, %s287
      %p294 = scmp.eq.s32.totalorder %s26, 3
      %p295 = por %p293, %p294
      %p296 = scmp.ne.s32.totalorder %s287, %s288
      %p297 = scmp.eq.s32.totalorder %s26, 0
      %p298 = por %p296, %p297
      %p299 = scmp.ne.s32.totalorder %s287, %s288
      %p300 = scmp.eq.s32.totalorder %s27, 3
      %p301 = por %p299, %p300
      %p303 = scmp.ne.s32.totalorder %s288, %s302
      %p304 = scmp.eq.s32.totalorder %s27, 0
      %p305 = por %p303, %p304
      %s306 = ssub.s32 %s21, %s28
      %p307 = scmp.eq.s32.totalorder %s306, 0
      %s309 = sadd.s32 %s308, 1
      %s310 = scalar_select %p307, %s308, %s309
      %p313 = pneg %p307
      %p314 = scmp.eq.s32.totalorder %s21, 3
      %p315 = por %p313, %p314
      %p316 = scmp.ne.s32.totalorder %s308, %s311
      %p317 = scmp.eq.s32.totalorder %s21, 0
      %p318 = por %p316, %p317
      %p319 = scmp.ne.s32.totalorder %s308, %s311
      %p320 = scmp.eq.s32.totalorder %s26, 3
      %p321 = por %p319, %p320
      %p322 = scmp.ne.s32.totalorder %s311, %s312
      %p323 = scmp.eq.s32.totalorder %s26, 0
      %p324 = por %p322, %p323
      %p325 = scmp.ne.s32.totalorder %s311, %s312
      %p326 = scmp.eq.s32.totalorder %s27, 3
      %p327 = por %p325, %p326
      %p329 = scmp.ne.s32.totalorder %s312, %s328
      %p330 = scmp.eq.s32.totalorder %s27, 0
      %p331 = por %p329, %p330
      %p332 = scmp.le.s32.totalorder 1, %s21
      %p333 = scmp.lt.s32.totalorder %s21, 5
      %p334 = pnand %p332, %p333
      %p335 = pneg %p334
      // Predicated region
      $region9: #{mace_layer_forward.1} parent=5 // pred_check
        _
      $region10: #{mace_layer_forward.1} parent=5 // pred_check_branch
        %337 = sbr.rel (%p334) target = $region12
      $region11: #{mace_layer_forward.1} parent=5 // pred_region
        %s338 = ssub.s32 %s21, 1
        // Predicated region
        $region13: #{mace_layer_forward.1} parent=11 // pred_check
          %p339 = pneg %p172
        $region14: #{mace_layer_forward.1} parent=11 // pred_check_branch
          %341 = sbr.rel (%p339) target = $region16
        $region15: #{mace_layer_forward.1} parent=11 // pred_region
          _
        $region16: #{mace_layer_forward.1} parent=11 // pred_fallthru
          _
        // Predicated region
        $region17: #{mace_layer_forward.1} parent=11 // pred_check
          %p342 = pneg %p193
        $region18: #{mace_layer_forward.1} parent=11 // pred_check_branch
          %344 = sbr.rel (%p342) target = $region20
        $region19: #{mace_layer_forward.1} parent=11 // pred_region
          _
        $region20: #{mace_layer_forward.1} parent=11 // pred_fallthru
          _
        // Predicated region
        $region21: #{mace_layer_forward.1} parent=11 // pred_check
          %p345 = pneg %p214
        $region22: #{mace_layer_forward.1} parent=11 // pred_check_branch
          %347 = sbr.rel (%p345) target = $region24
        $region23: #{mace_layer_forward.1} parent=11 // pred_region
          _
        $region24: #{mace_layer_forward.1} parent=11 // pred_fallthru
          _
        // Predicated region
        $region25: #{mace_layer_forward.1} parent=11 // pred_check
          %p348 = pneg %p235
        $region26: #{mace_layer_forward.1} parent=11 // pred_check_branch
          %350 = sbr.rel (%p348) target = $region28
        $region27: #{mace_layer_forward.1} parent=11 // pred_region
          _
        $region28: #{mace_layer_forward.1} parent=11 // pred_fallthru
          _
        // Predicated region
        $region29: #{mace_layer_forward.1} parent=11 // pred_check
          %p351 = pneg %p256
        $region30: #{mace_layer_forward.1} parent=11 // pred_check_branch
          %353 = sbr.rel (%p351) target = $region32
        $region31: #{mace_layer_forward.1} parent=11 // pred_region
          _
        $region32: #{mace_layer_forward.1} parent=11 // pred_fallthru
          _
        // Predicated region
        $region33: #{mace_layer_forward.1} parent=11 // pred_check
          %p354 = pneg %p277
        $region34: #{mace_layer_forward.1} parent=11 // pred_check_branch
          %356 = sbr.rel (%p354) target = $region36
        $region35: #{mace_layer_forward.1} parent=11 // pred_region
          _
        $region36: #{mace_layer_forward.1} parent=11 // pred_fallthru
          _
        // Predicated region
        $region37: #{mace_layer_forward.1} parent=11 // pred_check
          %p357 = pneg %p298
        $region38: #{mace_layer_forward.1} parent=11 // pred_check_branch
          %359 = sbr.rel (%p357) target = $region40
        $region39: #{mace_layer_forward.1} parent=11 // pred_region
          _
        $region40: #{mace_layer_forward.1} parent=11 // pred_fallthru
          _
      $region12: #{mace_layer_forward.1} parent=5 // pred_fallthru
        _
      %p360 = scmp.lt.s32.totalorder %s21, 4
      // Predicated region
      $region41: #{mace_layer_forward.1} parent=5 // pred_check
        %p361 = pneg %p360
      $region42: #{mace_layer_forward.1} parent=5 // pred_check_branch
        %363 = sbr.rel (%p361) target = $region44
      $region43: #{mace_layer_forward.1} parent=5 // pred_region
        // Predicated region
        $region45: #{mace_layer_forward.1} parent=43 // pred_check
          %p364 = pneg %p41
        $region46: #{mace_layer_forward.1} parent=43 // pred_check_branch
          %366 = sbr.rel (%p364) target = $region48
        $region47: #{mace_layer_forward.1} parent=43 // pred_region
          %p367 = scmp.lt.s32.totalorder %s21, 3
          %s368 = scalar_select %p367, %s21, 3
          %s369 = smul.addr %s368, 2
          %s370 = smul.addr %s369, 8
          %s371 = scalar_lea.vmem %s0, %s370
        $region48: #{mace_layer_forward.1} parent=43 // pred_fallthru
          _
        // Predicated region
        $region49: #{mace_layer_forward.1} parent=43 // pred_check
          %p372 = pneg %p67
        $region50: #{mace_layer_forward.1} parent=43 // pred_check_branch
          %374 = sbr.rel (%p372) target = $region52
        $region51: #{mace_layer_forward.1} parent=43 // pred_region
          %p375 = scmp.lt.s32.totalorder %s21, 3
          %s376 = scalar_select %p375, %s21, 3
          %s377 = scalar_lea.vmem %s1, %s376
        $region52: #{mace_layer_forward.1} parent=43 // pred_fallthru
          _
        // Predicated region
        $region53: #{mace_layer_forward.1} parent=43 // pred_check
          %p378 = pneg %p93
        $region54: #{mace_layer_forward.1} parent=43 // pred_check_branch
          %380 = sbr.rel (%p378) target = $region56
        $region55: #{mace_layer_forward.1} parent=43 // pred_region
          %p381 = scmp.lt.s32.totalorder %s21, 3
          %s382 = scalar_select %p381, %s21, 3
          %s383 = smul.addr %s382, 8
          %s384 = scalar_lea.vmem %s2, %s383
        $region56: #{mace_layer_forward.1} parent=43 // pred_fallthru
          _
        // Predicated region
        $region57: #{mace_layer_forward.1} parent=43 // pred_check
          %p385 = pneg %p119
        $region58: #{mace_layer_forward.1} parent=43 // pred_check_branch
          %387 = sbr.rel (%p385) target = $region60
        $region59: #{mace_layer_forward.1} parent=43 // pred_region
          %p388 = scmp.lt.s32.totalorder %s21, 3
          %s389 = scalar_select %p388, %s21, 3
          %s390 = smul.addr %s389, 8
          %s391 = scalar_lea.vmem %s3, %s390
        $region60: #{mace_layer_forward.1} parent=43 // pred_fallthru
          _
        // Predicated region
        $region61: #{mace_layer_forward.1} parent=43 // pred_check
          %p392 = pneg %p145
        $region62: #{mace_layer_forward.1} parent=43 // pred_check_branch
          %394 = sbr.rel (%p392) target = $region64
        $region63: #{mace_layer_forward.1} parent=43 // pred_region
          %p395 = scmp.lt.s32.totalorder %s21, 3
          %s396 = scalar_select %p395, %s21, 3
          %s397 = smul.addr %s396, 2
          %s398 = smul.addr %s397, 8
          %s399 = scalar_lea.vmem %s4, %s398
        $region64: #{mace_layer_forward.1} parent=43 // pred_fallthru
          _
      $region44: #{mace_layer_forward.1} parent=5 // pred_fallthru
        _
      %p400 = scmp.le.s32.totalorder 1, %s21
      %p401 = scmp.lt.s32.totalorder %s21, 5
      %p402 = pnand %p400, %p401
      %p403 = pneg %p402
      // Predicated region
      $region65: #{mace_layer_forward.1} parent=5 // pred_check
        _
      $region66: #{mace_layer_forward.1} parent=5 // pred_check_branch
        %405 = sbr.rel (%p402) target = $region68
      $region67: #{mace_layer_forward.1} parent=5 // pred_region
        %s406 = ssub.s32 %s21, 1
        %p407 = scmp.lt.s32.totalorder %s26, 3
        %s408 = scalar_select %p407, %s26, 3
        %s409 = smul.addr %s408, 2
        %s410 = smul.addr %s409, 8
        %s411 = scalar_lea.vmem %s0, %s410
        %p412 = pneg %p47
        %p413 = pneg %p44
        %p414 = scmp.lt.s32.totalorder %s26, 3
        %s415 = scalar_select %p414, %s26, 3
        %s416 = scalar_lea.vmem %s1, %s415
        %p417 = pneg %p73
        %p418 = pneg %p70
        %p419 = scmp.lt.s32.totalorder %s26, 3
        %s420 = scalar_select %p419, %s26, 3
        %s421 = smul.addr %s420, 8
        %s422 = scalar_lea.vmem %s2, %s421
        %p423 = pneg %p99
        %p424 = pneg %p96
        %p425 = scmp.lt.s32.totalorder %s26, 3
        %s426 = scalar_select %p425, %s26, 3
        %s427 = smul.addr %s426, 8
        %s428 = scalar_lea.vmem %s3, %s427
        %p429 = pneg %p125
        %p430 = pneg %p122
        %p431 = scmp.lt.s32.totalorder %s26, 3
        %s432 = scalar_select %p431, %s26, 3
        %s433 = smul.addr %s432, 2
        %s434 = smul.addr %s433, 8
        %s435 = scalar_lea.vmem %s4, %s434
        %p436 = pneg %p151
        %p437 = pneg %p148
        %p438 = pneg %p172
        %p439 = pneg %p169
        %p440 = pneg %p193
        %p441 = pneg %p190
        %p442 = pneg %p214
        %p443 = pneg %p211
        %p444 = pneg %p235
        %p445 = pneg %p232
        %p446 = pneg %p256
        %p447 = pneg %p253
        %p448 = pneg %p277
        %p449 = pneg %p274
        %p450 = pneg %p298
        %p451 = pneg %p295
        %p452 = pneg %p324
        %p453 = pneg %p321
        %s454 = sand.u32 %s311, 1
        %s455 = scalar_lea.sflag [#allocation3], %s454
        %s456 = sand.u32 %s311, 1
        %s457 = smul.addr %s456, 8
        %s458 = scalar_lea.vmem [#allocation2], %s457
        %p459 = scmp.lt.s32.totalorder %s26, 3
        %s460 = scalar_select %p459, %s26, 3
        %s461 = smul.addr %s460, 2
        %s462 = smul.addr %s461, 8
        %s463 = scalar_lea.vmem %s0, %s462
        %p464 = scmp.lt.s32.totalorder %s26, 3
        %s465 = scalar_select %p464, %s26, 3
        %s466 = scalar_lea.vmem %s1, %s465
        %p467 = scmp.lt.s32.totalorder %s26, 3
        %s468 = scalar_select %p467, %s26, 3
        %s469 = smul.addr %s468, 8
        %s470 = scalar_lea.vmem %s2, %s469
        %p471 = scmp.lt.s32.totalorder %s26, 3
        %s472 = scalar_select %p471, %s26, 3
        %s473 = smul.addr %s472, 8
        %s474 = scalar_lea.vmem %s3, %s473
        %p475 = scmp.lt.s32.totalorder %s26, 3
        %s476 = scalar_select %p475, %s26, 3
        %s477 = smul.addr %s476, 2
        %s478 = smul.addr %s477, 8
        %s479 = scalar_lea.vmem %s4, %s478
        %v481 = vld [vmem:[%s470] sm:$0xff]
        %v482 = vld [vmem:[%s474] sm:$0xff]
        %v483 = vpack.c.bf16 %v481, %v481
        %v484 = vld [vmem:[%s5] sm:$0xf]
        %v485 = vld [vmem:[%s5 + $0x4] sm:$0xf]
        %v486 = vld [vmem:[%s5 + $0x8] sm:$0xf]
        %v487 = vld [vmem:[%s5 + $0xc] sm:$0xf]
        %v492 = vunpack.c.l.b16 %v484
        %v493 = vunpack.c.l.b16 %v485
        %v494 = vunpack.c.l.b16 %v486
        %v495 = vunpack.c.l.b16 %v487
        %v496 = vpack.c.b16 %v493, %v492
        %v497 = vpack.c.b16 %v495, %v494
        %vm500 = vcmask 261120
        %v502 = vsel %vm500, %v483, 0
        %504 = vmatpush.bf16.msra.mxu0 0
        %505 = vmatpush.bf16.msra.mxu0 0
        %506 = vmatpush.bf16.msra.mxu0 0
        %507 = vmatpush.bf16.msra.mxu0 0
        %508 = vmatpush.bf16.msra.mxu0 0
        %509 = vmatpush.bf16.msra.mxu0 0
        %510 = vmatpush.bf16.msra.mxu0 %v497
        %511 = vmatpush.bf16.msra.mxu0 %v496
        %512 = vmatmul.bf16.gmra.mxu0 %v502
        %v513 = vpop.f32.mrf.mxu0
        %v514 = vadd.f32 0.0, %v513
        %v515 = vpop.f32.mrf.mxu0
        %516 = vdwg.mxu0
        %v517 = vld [vmem:[%s479] sm:$0xff]
        %v518 = vld [vmem:[%s479 + $0x8] sm:$0xff]
        %v519 = vpack.c.bf16 %v518, %v517
        %v520 = vld [vmem:[%s6] sm:$0xf]
        %vm521 = vcmask 64512
        %v523 = vsel %vm521, %v519, 0
        %vm525 = vcmask 1043456
        %v527 = vsel %vm525, %v520, 0
        %529 = vmatpush.bf16.msra.mxu0 0
        %530 = vmatpush.bf16.msra.mxu0 0
        %531 = vmatpush.bf16.msra.mxu0 0
        %532 = vmatpush.bf16.msra.mxu0 0
        %533 = vmatpush.bf16.msra.mxu0 0
        %534 = vmatpush.bf16.msra.mxu0 0
        %535 = vmatpush.bf16.msra.mxu0 0
        %536 = vmatpush.bf16.msra.mxu0 %v527
        %537 = vmatmul.bf16.gmra.mxu0 %v523
        %v538 = vpop.f32.mrf.mxu0
        %v539 = vadd.f32 0.0, %v538
        %v540 = vpop.f32.mrf.mxu0
        %v541 = vadd.f32 0.0, %v540
        %542 = vdwg.mxu0
        %v543 = vxor.u32 %v539, 2147483648
        %v544 = vxor.u32 %v541, 2147483648
        %v545 = vmul.f32 %v543, 1.442695
        %v546 = vpow.pop %v545
        %v547 = vmul.f32 %v544, 1.442695
        %v548 = vpow.pop %v547
        %v549 = vadd.f32 %v546, 1.0
        %v550 = vadd.f32 %v548, 1.0
        %v551 = vrcp.pop %v549
        %v552 = vmul.f32 %v549, %v551
        %v553 = vsub.f32 1.0, %v552
        %v554 = vmul.f32 %v551, %v553
        %v555 = vadd.f32 %v551, %v554
        %vm556 = vweird.f32 %v549
        %vm557 = vweird.f32 %v551
        %vm558 = vmor %vm556, %vm557
        %v559 = vsel %vm558, %v551, %v555
        %v560 = vand.u32 2147483647, %v549
        %vm561 = vcmp.eq.f32.partialorder %v560, 8.507059e+37
        %v562 = vand.u32 %v549, 2147483648
        %v563 = vor.u32 1.1754944e-38, %v562
        %v564 = vsel %vm561, %v563, %v559
        %v565 = vmul.f32 1.0, %v564
        %v566 = vrcp.pop %v550
        %v567 = vmul.f32 %v550, %v566
        %v568 = vsub.f32 1.0, %v567
        %v569 = vmul.f32 %v566, %v568
        %v570 = vadd.f32 %v566, %v569
        %vm571 = vweird.f32 %v550
        %vm572 = vweird.f32 %v566
        %vm573 = vmor %vm571, %vm572
        %v574 = vsel %vm573, %v566, %v570
        %v575 = vand.u32 2147483647, %v550
        %vm576 = vcmp.eq.f32.partialorder %v575, 8.507059e+37
        %v577 = vand.u32 %v550, 2147483648
        %v578 = vor.u32 1.1754944e-38, %v577
        %v579 = vsel %vm576, %v578, %v574
        %v580 = vmul.f32 1.0, %v579
        %v581 = vmul.f32 %v539, %v565
        %v582 = vmul.f32 %v541, %v580
        %v583 = vpack.c.bf16 %v582, %v581
        %v584 = vld [vmem:[%s7] sm:$0xf]
        %v585 = vld [vmem:[%s7 + $0x4] sm:$0xf]
        %v588 = vunpack.c.l.b16 %v584
        %v589 = vunpack.c.l.b16 %v585
        %v590 = vpack.c.b16 %v589, %v588
        %vm592 = vcmask 130048
        %v594 = vsel %vm592, %v583, 0
        %596 = vmatpush.bf16.msra.mxu0 0
        %597 = vmatpush.bf16.msra.mxu0 0
        %598 = vmatpush.bf16.msra.mxu0 0
        %599 = vmatpush.bf16.msra.mxu0 0
        %600 = vmatpush.bf16.msra.mxu0 0
        %601 = vmatpush.bf16.msra.mxu0 0
        %602 = vmatpush.bf16.msra.mxu0 0
        %603 = vmatpush.bf16.msra.mxu0 %v590
        %604 = vmatmul.bf16.gmra.mxu0 %v594
        %v605 = vpop.f32.mrf.mxu0
        %v606 = vadd.f32 0.0, %v605
        %v607 = vpop.f32.mrf.mxu0
        %v608 = vadd.f32 0.0, %v607
        %609 = vdwg.mxu0
        %v610 = vld [vmem:[%s463] sm:$0xff]
        %v611 = vld [vmem:[%s463 + $0x8] sm:$0xff]
        %v612 = vld [vmem:[%s466] sm:$0x1]
        %v613 = vlaneseq
        %v614 = vand.u32 %v613, 127
        %615 = vset.pattern.permute.xlu0 0
        %616 = vperm.xlu0 %615, %v610
        %v617 = vpop.permute.xlu0 %616
        %618 = vset.pattern.permute.xlu0 0
        %619 = vperm.xlu0 %618, %v611
        %v620 = vpop.permute.xlu0 %619
        %vm621 = vcmp.eq.s32.totalorder %v614, %v617
        %vm622 = vcmp.eq.s32.totalorder %v614, %v620
        %v623 = vsel %vm621, 1, 0
        %v624 = vsel %vm622, 1, 0
        %v625 = vcvt.s32.f32 %v623
        %v626 = vcvt.s32.f32 %v624
        %v627 = vlaneseq
        %v628 = vshrl.u32 %v627, 7
        %v629 = vperm.slane %v612, 0
        %vm630 = vcmp.eq.s32.totalorder %v628, %v629
        %v631 = vsel %vm630, 1, 0
        %v632 = vcvt.s32.f32 %v631
        %v634 = vsel %vm521, %v625, 0
        %v637 = vsel %vm521, %v626, 0
        %639 = vmatpush.msra.mxu0 0.0
        %640 = vmatpush.msra.mxu0 0.0
        %641 = vmatpush.msra.mxu0 0.0
        %642 = vmatpush.msra.mxu0 0.0
        %643 = vmatpush.msra.mxu0 0.0
        %644 = vmatpush.msra.mxu0 0.0
        %645 = vmatpush.msra.mxu0 0.0
        %646 = vmatpush.msra.mxu0 0.0
        %647 = vmatpush.msra.mxu0 0.0
        %648 = vmatpush.msra.mxu0 0.0
        %649 = vmatpush.msra.mxu0 0.0
        %650 = vmatpush.msra.mxu0 0.0
        %651 = vmatpush.msra.mxu0 0.0
        %652 = vmatpush.msra.mxu0 0.0
        %653 = vmatpush.msra.mxu0 0.0
        %654 = vmatpush.msra.mxu0 %v514
        %655 = vmatmul.f32.gmra.mxu0 %v634
        %v656 = vpop.f32.mrf.mxu0
        %v657 = vadd.f32 0.0, %v656
        %658 = vmatmul.f32.gmra.mxu0 %v637
        %v659 = vpop.f32.mrf.mxu0
        %v660 = vadd.f32 0.0, %v659
        %661 = vdwg.mxu0
        %v662 = vmul.f32 %v657, %v606
        %v663 = vmul.f32 %v660, %v608
        %v665 = vsel %vm592, %v632, 0
        %667 = vmatpush.msra.mxu0 0.0
        %668 = vmatpush.msra.mxu0 0.0
        %669 = vmatpush.msra.mxu0 0.0
        %670 = vmatpush.msra.mxu0 0.0
        %671 = vmatpush.msra.mxu0 0.0
        %672 = vmatpush.msra.mxu0 0.0
        %673 = vmatpush.msra.mxu0 0.0
        %674 = vmatpush.msra.mxu0 0.0
        %675 = vmatpush.msra.mxu0 0.0
        %676 = vmatpush.msra.mxu0 0.0
        %677 = vmatpush.msra.mxu0 0.0
        %678 = vmatpush.msra.mxu0 0.0
        %679 = vmatpush.msra.mxu0 0.0
        %680 = vmatpush.msra.mxu0 0.0
        %681 = vmatpush.msra.mxu0 %v663
        %682 = vmatpush.msra.mxu0 %v662
        %683 = vmatmul.f32.gmra.mxu0 %v665
        %v684 = vpop.f32.mrf.mxu0
        %v685 = vadd.f32 0.0, %v684
        %686 = vdwg.mxu0
        %v687 = vpack.c.bf16 %v685, %v685
        %v688 = vld [vmem:[%s8] sm:$0xf]
        %v689 = vld [vmem:[%s8 + $0x4] sm:$0xf]
        %v690 = vld [vmem:[%s8 + $0x8] sm:$0xf]
        %v691 = vld [vmem:[%s8 + $0xc] sm:$0xf]
        %v696 = vunpack.c.l.b16 %v688
        %v697 = vunpack.c.l.b16 %v689
        %v698 = vunpack.c.l.b16 %v690
        %v699 = vunpack.c.l.b16 %v691
        %v700 = vpack.c.b16 %v697, %v696
        %v701 = vpack.c.b16 %v699, %v698
        %v705 = vsel %vm500, %v687, 0
        %707 = vmatpush.bf16.msra.mxu0 0
        %708 = vmatpush.bf16.msra.mxu0 0
        %709 = vmatpush.bf16.msra.mxu0 0
        %710 = vmatpush.bf16.msra.mxu0 0
        %711 = vmatpush.bf16.msra.mxu0 0
        %712 = vmatpush.bf16.msra.mxu0 0
        %713 = vmatpush.bf16.msra.mxu0 %v701
        %714 = vmatpush.bf16.msra.mxu0 %v700
        %715 = vmatmul.bf16.gmra.mxu0 %v705
        %v716 = vpop.f32.mrf.mxu0
        %v717 = vadd.f32 0.0, %v716
        %v718 = vpop.f32.mrf.mxu0
        %719 = vdwg.mxu0
        %v720 = vpack.c.bf16 %v482, %v482
        %s721 = scalar_lea.vmem %s9, 4
        %v722 = vld [vmem:[%s721] sm:$0x3]
        %vm723 = vcmask 31744
        %v725 = vsel %vm723, %v720, 0
        %vm727 = vcmask 1041408
        %v729 = vsel %vm727, %v722, 0
        %731 = vmatpush.bf16.msra.mxu0 0
        %732 = vmatpush.bf16.msra.mxu0 0
        %733 = vmatpush.bf16.msra.mxu0 0
        %734 = vmatpush.bf16.msra.mxu0 0
        %735 = vmatpush.bf16.msra.mxu0 0
        %736 = vmatpush.bf16.msra.mxu0 0
        %737 = vmatpush.bf16.msra.mxu0 0
        %738 = vmatpush.bf16.msra.mxu0 %v729
        %739 = vmatmul.bf16.gmra.mxu0 %v725
        %v740 = vpop.f32.mrf.mxu0
        %v741 = vadd.f32 0.0, %v740
        %v742 = vpop.f32.mrf.mxu0
        %743 = vdwg.mxu0
        %v744 = vmul.f32 %v741, %v717
        %s745 = scalar_lea.vmem %s9, 2
        %v746 = vld [vmem:[%s745] sm:$0x3]
        %v748 = vsel %vm727, %v746, 0
        %750 = vmatpush.bf16.msra.mxu0 0
        %751 = vmatpush.bf16.msra.mxu0 0
        %752 = vmatpush.bf16.msra.mxu0 0
        %753 = vmatpush.bf16.msra.mxu0 0
        %754 = vmatpush.bf16.msra.mxu0 0
        %755 = vmatpush.bf16.msra.mxu0 0
        %756 = vmatpush.bf16.msra.mxu0 0
        %757 = vmatpush.bf16.msra.mxu0 %v748
        %758 = vmatmul.bf16.gmra.mxu0 %v725
        %v759 = vpop.f32.mrf.mxu0
        %v760 = vadd.f32 0.0, %v759
        %v761 = vpop.f32.mrf.mxu0
        %762 = vdwg.mxu0
        %v763 = vadd.f32 %v744, %v760
        %v764 = vmul.f32 %v763, %v717
        %v765 = vld [vmem:[%s9] sm:$0x3]
        %v767 = vsel %vm727, %v765, 0
        %769 = vmatpush.bf16.msra.mxu0 0
        %770 = vmatpush.bf16.msra.mxu0 0
        %771 = vmatpush.bf16.msra.mxu0 0
        %772 = vmatpush.bf16.msra.mxu0 0
        %773 = vmatpush.bf16.msra.mxu0 0
        %774 = vmatpush.bf16.msra.mxu0 0
        %775 = vmatpush.bf16.msra.mxu0 0
        %776 = vmatpush.bf16.msra.mxu0 %v767
        %777 = vmatmul.bf16.gmra.mxu0 %v725
        %v778 = vpop.f32.mrf.mxu0
        %v779 = vadd.f32 0.0, %v778
        %v780 = vpop.f32.mrf.mxu0
        %781 = vdwg.mxu0
        %v782 = vadd.f32 %v764, %v779
        %v783 = vmul.f32 %v782, %v717
        %785 = vset.pattern.permute.xlu0 0
        %786 = vperm.xlu0 %785, %v482
        %v787 = vpop.permute.xlu0 %786
        %v789 = vmul.f32 %v481, %v787
        %790 = vset.pattern.permute.xlu0 1
        %791 = vperm.xlu0 %790, %v482
        %v792 = vpop.permute.xlu0 %791
        %v794 = vmul.f32 %v481, %v792
        %795 = vset.pattern.permute.xlu0 2
        %796 = vperm.xlu0 %795, %v482
        %v797 = vpop.permute.xlu0 %796
        %v799 = vmul.f32 %v481, %v797
        %800 = vset.pattern.permute.xlu0 3
        %801 = vperm.xlu0 %800, %v482
        %v802 = vpop.permute.xlu0 %801
        %v804 = vmul.f32 %v481, %v802
        %806 = vrot.lane.b32.xlu0 %v794, 32
        %v807 = vpop.permute.xlu0 %806
        %810 = vrot.lane.b32.xlu0 %v799, 64
        %v811 = vpop.permute.xlu0 %810
        %814 = vrot.lane.b32.xlu0 %v804, 96
        %v815 = vpop.permute.xlu0 %814
        %v817 = vsel %vm500, %v789, %v807
        %vm818 = vcmask 523264
        %v819 = vsel %vm818, %v817, %v811
        %vm820 = vcmask 785408
        %v821 = vsel %vm820, %v819, %v815
        %v822 = vpack.c.bf16 %v821, %v821
        %v823 = vld [vmem:[%s10] sm:$0xf]
        %v824 = vld [vmem:[%s10 + $0x4] sm:$0xf]
        %v825 = vld [vmem:[%s10 + $0x8] sm:$0xf]
        %v826 = vld [vmem:[%s10 + $0xc] sm:$0xf]
        %v827 = vld [vmem:[%s10 + $0x10] sm:$0xf]
        %v828 = vld [vmem:[%s10 + $0x14] sm:$0xf]
        %v829 = vld [vmem:[%s10 + $0x18] sm:$0xf]
        %v830 = vld [vmem:[%s10 + $0x1c] sm:$0xf]
        %v831 = vld [vmem:[%s10 + $0x20] sm:$0xf]
        %v832 = vld [vmem:[%s10 + $0x24] sm:$0xf]
        %v833 = vld [vmem:[%s10 + $0x28] sm:$0xf]
        %v834 = vld [vmem:[%s10 + $0x2c] sm:$0xf]
        %v835 = vld [vmem:[%s10 + $0x30] sm:$0xf]
        %v836 = vld [vmem:[%s10 + $0x34] sm:$0xf]
        %v837 = vld [vmem:[%s10 + $0x38] sm:$0xf]
        %v838 = vld [vmem:[%s10 + $0x3c] sm:$0xf]
        %v855 = vunpack.c.l.b16 %v823
        %v856 = vunpack.c.l.b16 %v824
        %v857 = vunpack.c.l.b16 %v825
        %v858 = vunpack.c.l.b16 %v826
        %v859 = vunpack.c.l.b16 %v827
        %v860 = vunpack.c.l.b16 %v828
        %v861 = vunpack.c.l.b16 %v829
        %v862 = vunpack.c.l.b16 %v830
        %v863 = vunpack.c.l.b16 %v831
        %v864 = vunpack.c.l.b16 %v832
        %v865 = vunpack.c.l.b16 %v833
        %v866 = vunpack.c.l.b16 %v834
        %v867 = vunpack.c.l.b16 %v835
        %v868 = vunpack.c.l.b16 %v836
        %v869 = vunpack.c.l.b16 %v837
        %v870 = vunpack.c.l.b16 %v838
        %v871 = vpack.c.b16 %v856, %v855
        %v872 = vpack.c.b16 %v858, %v857
        %v873 = vpack.c.b16 %v860, %v859
        %v874 = vpack.c.b16 %v862, %v861
        %v875 = vpack.c.b16 %v864, %v863
        %v876 = vpack.c.b16 %v866, %v865
        %v877 = vpack.c.b16 %v868, %v867
        %v878 = vpack.c.b16 %v870, %v869
        %887 = vmatpush.bf16.msra.mxu0 %v878
        %888 = vmatpush.bf16.msra.mxu0 %v877
        %889 = vmatpush.bf16.msra.mxu0 %v876
        %890 = vmatpush.bf16.msra.mxu0 %v875
        %891 = vmatpush.bf16.msra.mxu0 %v874
        %892 = vmatpush.bf16.msra.mxu0 %v873
        %893 = vmatpush.bf16.msra.mxu0 %v872
        %894 = vmatpush.bf16.msra.mxu0 %v871
        %895 = vmatmul.bf16.gmra.mxu0 %v822
        %v896 = vpop.f32.mrf.mxu0
        %v897 = vadd.f32 0.0, %v896
        %v898 = vpop.f32.mrf.mxu0
        %899 = vdwg.mxu0
        %v900 = vadd.f32 %v783, %v897
        %v901 = vpack.c.bf16 %v900, %v900
        %v902 = vld [vmem:[%s11] sm:$0xf]
        %v903 = vld [vmem:[%s11 + $0x4] sm:$0xf]
        %v904 = vld [vmem:[%s11 + $0x8] sm:$0xf]
        %v905 = vld [vmem:[%s11 + $0xc] sm:$0xf]
        %v910 = vunpack.c.l.b16 %v902
        %v911 = vunpack.c.l.b16 %v903
        %v912 = vunpack.c.l.b16 %v904
        %v913 = vunpack.c.l.b16 %v905
        %v914 = vpack.c.b16 %v911, %v910
        %v915 = vpack.c.b16 %v913, %v912
        %v919 = vsel %vm500, %v901, 0
        %921 = vmatpush.bf16.msra.mxu0 0
        %922 = vmatpush.bf16.msra.mxu0 0
        %923 = vmatpush.bf16.msra.mxu0 0
        %924 = vmatpush.bf16.msra.mxu0 0
        %925 = vmatpush.bf16.msra.mxu0 0
        %926 = vmatpush.bf16.msra.mxu0 0
        %927 = vmatpush.bf16.msra.mxu0 %v915
        %928 = vmatpush.bf16.msra.mxu0 %v914
        %929 = vmatmul.bf16.gmra.mxu0 %v919
        %v930 = vpop.f32.mrf.mxu0
        %v931 = vadd.f32 0.0, %v930
        %v932 = vpop.f32.mrf.mxu0
        %933 = vdwg.mxu0
        %934 = vst.msk [vmem:[%s458] sm:$0xff] %vm500, %v931
        %s935 = sand.u32 %s311, 1
        %s936 = scalar_lea.sflag [#allocation3], %s935
        %s937 = sand.u32 %s311, 1
        %s938 = smul.addr %s937, 8
        %s939 = scalar_lea.vmem [#allocation2], %s938
        // Predicated region
        $region69: #{mace_layer_forward.1} parent=67 // pred_check
          %p940 = pneg %p321
        $region70: #{mace_layer_forward.1} parent=67 // pred_check_branch
          %942 = sbr.rel (%p940) target = $region72
        $region71: #{mace_layer_forward.1} parent=67 // pred_region
          %944 = vsyncadd %s936, 0
          %s945 = smul.addr %s26, 8
          %s946 = scalar_lea.hbm %s12, %s945
          %s948 = sshll.u32 %s939, 4
          %s949 = int_to_ptr.vmem [resolvable:$true] %s948
          %s950 = sshll.u32 %s946, 4
          %s951 = int_to_ptr.hbm [resolvable:$true] %s950
          %953 = dma.vmem_to_hbm [thread:$0]  %s949, 128, %s951, %s936
        $region72: #{mace_layer_forward.1} parent=67 // pred_fallthru
          _
      $region68: #{mace_layer_forward.1} parent=5 // pred_fallthru
        _
      %p954 = scmp.le.s32.totalorder 2, %s21
      // Predicated region
      $region73: #{mace_layer_forward.1} parent=5 // pred_check
        %p955 = pneg %p954
      $region74: #{mace_layer_forward.1} parent=5 // pred_check_branch
        %957 = sbr.rel (%p955) target = $region76
      $region75: #{mace_layer_forward.1} parent=5 // pred_region
        %s958 = ssub.s32 %s21, 2
        // Predicated region
        $region77: #{mace_layer_forward.1} parent=75 // pred_check
          %p959 = pneg %p327
        $region78: #{mace_layer_forward.1} parent=75 // pred_check_branch
          %961 = sbr.rel (%p959) target = $region80
        $region79: #{mace_layer_forward.1} parent=75 // pred_region
          %s962 = sand.u32 %s312, 1
          %s963 = scalar_lea.sflag [#allocation3], %s962
          %s964 = sand.u32 %s312, 1
          %s965 = smul.addr %s964, 8
          %s966 = scalar_lea.vmem [#allocation2], %s965
          %968 = dma.done %s963, 128
        $region80: #{mace_layer_forward.1} parent=75 // pred_fallthru
          _
      $region76: #{mace_layer_forward.1} parent=5 // pred_fallthru
        _
    $region6: #{mace_layer_forward.1} parent=1 // loop_footer
      %s25 = sadd.s32 1, %s21
    $region7: #{mace_layer_forward.1} parent=1 // loop_footer_branch
      %20 = sbr.rel target = $region3
    $region8: #{mace_layer_forward.1} parent=1 // loop_exit
      _
    %969 = vsyncpa [#allocation3], 1
    %s970 = scalar_lea.sflag [#allocation3], 1
    %971 = vsyncpa %s970, 1

</llo_original>
